<compile_context>
chip_gen: v7x
topology: tpu7x:2x2x1
jax: 0.10.0
libtpu: 0.0.40
codegen_flags: <defaults>
</compile_context>

<pallas_src>
import numpy as np
import jax
import jax.numpy as jnp
from jax.experimental import pallas as pl
from jax.experimental.pallas import tpu as pltpu

CLASS_NUM = 6
IGNORE = 255
PERCENT = 0.9
MAX_REGIONS = 16          # static upper bound on superpixel region ids (LUT assumes 16)
LANE = 128
A_TILE_ROWS = 512         # Phase A: 512*128 = 65536 px / grid step
B_TILE_ROWS = 2048        # Phase B: 2048*128 = 262144 px / grid step (multiple of A_TILE_ROWS)
VMEM_LIMIT = 32 * 1024 * 1024   # <= physical VMEM on v5e/v6e/v7x, >= default scoped limits

assert MAX_REGIONS == 16, "Phase B packs region decisions into four 32-bit LUT words."
assert B_TILE_ROWS % A_TILE_ROWS == 0


def _round_up(x, m):
    return ((x + m - 1) // m) * m


# ----------------------------- Phase A: histogram -----------------------------
def hist_kernel(lab_ref, reg_ref, rid_ref, lab8_ref, reg8_ref, acc_ref):
    t = pl.program_id(1)

    @pl.when(t == 0)
    def _():
        acc_ref[...] = jnp.zeros_like(acc_ref)

    labels = lab_ref[0]       # (1, NPIX) int32
    regions = reg_ref[0]      # (1, NPIX) int32

    # Fused downcast: uint8 side copies consumed by Phase B.  Labels (incl.
    # ignore=255) and region ids (< MAX_REGIONS) fit in u8; this removes the
    # separate XLA pad/cast pass over HBM that the previous revision needed.
    lab8_ref[0] = labels.astype(jnp.uint8)
    reg8_ref[0] = regions.astype(jnp.uint8)

    npix = labels.shape[-1]
    # One-hots in bf16 (values exactly 0/1, accumulation in f32).  ignore_label=255
    # matches no class row, reproducing the "one_hot(C+1)[..., :-1]" trick.
    c_iota = jax.lax.broadcasted_iota(jnp.int32, (CLASS_NUM, npix), 0)
    label_oh = (labels == c_iota).astype(jnp.bfloat16)           # (C, NPIX)
    r_iota = jax.lax.broadcasted_iota(jnp.int32, (MAX_REGIONS, npix), 0)
    region_oh = (regions == r_iota).astype(jnp.bfloat16)         # (R, NPIX)

    # (R, C) per-region per-class pixel counts, contracting the pixel (lane) axis.
    # label_oh (6 rows) is the rhs, so a canonicalization transpose (if any) hits
    # the smaller operand rather than the 16-row region one-hot.
    acc_ref[...] += jax.lax.dot_general(
        region_oh, label_oh,
        dimension_numbers=(((1,), (1,)), ((), ())),
        preferred_element_type=jnp.float32)

    @pl.when(t == pl.num_programs(1) - 1)
    def _():
        counts = acc_ref[...]                                    # (R, C) f32
        pixel_num = jnp.sum(counts, axis=1, keepdims=True)       # (R, 1)
        class_max = jnp.max(counts, axis=1, keepdims=True)       # (R, 1)
        cls_iota = jax.lax.broadcasted_iota(jnp.int32, (MAX_REGIONS, CLASS_NUM), 1)
        arg_max = jnp.min(                                       # first-occurrence argmax
            jnp.where(counts == class_max, cls_iota, jnp.int32(CLASS_NUM)),
            axis=1, keepdims=True)                               # (R, 1)
        ratio = class_max / (pixel_num + 1e-5)
        rid_ref[0] = jnp.where(ratio < PERCENT, jnp.int32(IGNORE), arg_max)


# ----------------------------- Phase B: LUT gather ------------------------------
def gather_kernel(rid_ref, lab_ref, reg_ref, out_ref):
    b = pl.program_id(0)
    labels = lab_ref[0].astype(jnp.int32)      # (T_ROWS, 128)
    regions = reg_ref[0].astype(jnp.int32)     # (T_ROWS, 128)

    # Scalar prologue (SMEM-only): pack the 16 region decisions (8 bits each,
    # IGNORE=255 fits) into four broadcastable int32 LUT words.  Region 0 is
    # forced to IGNORE here — the torch module always drops superpixel 0.
    def rid_at(i):
        if i == 0:
            return jnp.int32(IGNORE)
        return rid_ref[b, i]

    words = []
    for g in range(4):
        wd = jnp.int32(0)
        for j in range(4):
            wd = wd | ((rid_at(4 * g + j) & 0xFF) << (8 * j))
        words.append(wd)

    # Per-pixel packed-LUT lookup: select the word on region bits [3:2], the byte
    # on bits [1:0] via a per-lane shift, then a single IGNORE fallback.
    bit2 = (regions & 4) != 0
    bit3 = (regions & 8) != 0
    w01 = jnp.where(bit2, words[1], words[0])
    w23 = jnp.where(bit2, words[3], words[2])
    word = jnp.where(bit3, w23, w01)
    shift = (regions & 3) << 3
    refined = jax.lax.shift_right_logical(word, shift) & 0xFF
    # Region ids >= MAX_REGIONS keep their original pseudo label (static bound).
    refined = jnp.where(regions < MAX_REGIONS, refined, jnp.int32(IGNORE))
    out = jnp.where(refined == jnp.int32(IGNORE), labels, refined)
    out_ref[0] = out.astype(out_ref.dtype)


# ----------------------------- Wrapper -------------------------------------------
def homogenize(pseudo_labels, regions, out_dtype=jnp.uint8):
    """pseudo_labels, regions: (B, H, W) integer (labels in [0,255], regions in
    [0, MAX_REGIONS)).  Returns refined pseudo labels (B, H, W).  Values are
    0..CLASS_NUM-1 or IGNORE, so the default uint8 output halves Phase B HBM
    traffic; pass out_dtype=jnp.int32 for dtype parity with the torch module."""
    b, h, w = pseudo_labels.shape
    hw = h * w

    rows = (hw + LANE - 1) // LANE
    a_rows = min(A_TILE_ROWS, _round_up(rows, 8))
    if rows > B_TILE_ROWS:
        rows_pad = _round_up(rows, B_TILE_ROWS)
        b_rows = B_TILE_ROWS
    else:
        rows_pad = _round_up(rows, a_rows)
        b_rows = rows_pad                      # single Phase B tile, multiple of a_rows
    hw_pad = rows_pad * LANE
    n_a = rows_pad // a_rows
    n_b = rows_pad // b_rows
    a_npix = a_rows * LANE

    lab = pseudo_labels.reshape(b, hw).astype(jnp.int32)
    reg = regions.reshape(b, hw).astype(jnp.int32)
    if hw_pad != hw:
        # Only materialize padding when H*W is not tile-aligned.  Padded pixels use
        # label=IGNORE (counted in no class) and region=0 (always falls back to the
        # original label) and are sliced away at the end.
        lab = jnp.full((b, hw_pad), IGNORE, dtype=jnp.int32).at[:, :hw].set(lab)
        reg = jnp.zeros((b, hw_pad), dtype=jnp.int32).at[:, :hw].set(reg)

    # --- Phase A: per-region class histogram -> region decision + u8 pixel copies ---
    region_id, lab8, reg8 = pl.pallas_call(
        hist_kernel,
        out_shape=(jax.ShapeDtypeStruct((b, MAX_REGIONS, 1), jnp.int32),
                   jax.ShapeDtypeStruct((b, 1, hw_pad), jnp.uint8),
                   jax.ShapeDtypeStruct((b, 1, hw_pad), jnp.uint8)),
        grid=(b, n_a),
        in_specs=[pl.BlockSpec((1, 1, a_npix), lambda i, t: (i, 0, t)),
                  pl.BlockSpec((1, 1, a_npix), lambda i, t: (i, 0, t))],
        out_specs=[pl.BlockSpec((1, MAX_REGIONS, 1), lambda i, t: (i, 0, 0)),
                   pl.BlockSpec((1, 1, a_npix), lambda i, t: (i, 0, t)),
                   pl.BlockSpec((1, 1, a_npix), lambda i, t: (i, 0, t))],
        scratch_shapes=[pltpu.VMEM((MAX_REGIONS, CLASS_NUM), jnp.float32)],
        compiler_params=pltpu.CompilerParams(
            dimension_semantics=("parallel", "arbitrary"),
            vmem_limit_bytes=VMEM_LIMIT),
    )(lab.reshape(b, 1, hw_pad), reg.reshape(b, 1, hw_pad))

    # --- Phase B: packed-LUT gather back to pixels (sublane/lane-dense u8 tiles) ---
    out = pl.pallas_call(
        gather_kernel,
        out_shape=jax.ShapeDtypeStruct((b, rows_pad, LANE), out_dtype),
        grid_spec=pltpu.PrefetchScalarGridSpec(
            num_scalar_prefetch=1,
            grid=(b, n_b),
            in_specs=[pl.BlockSpec((1, b_rows, LANE), lambda i, t, rid: (i, t, 0)),
                      pl.BlockSpec((1, b_rows, LANE), lambda i, t, rid: (i, t, 0))],
            out_specs=pl.BlockSpec((1, b_rows, LANE), lambda i, t, rid: (i, t, 0)),
        ),
        compiler_params=pltpu.CompilerParams(
            dimension_semantics=("parallel", "parallel"),
            vmem_limit_bytes=VMEM_LIMIT),
    )(region_id.reshape(b, MAX_REGIONS),
      lab8.reshape(b, rows_pad, LANE),
      reg8.reshape(b, rows_pad, LANE))

    return out.reshape(b, hw_pad)[:, :hw].reshape(b, h, w)


# ----------------------------- Reference (numpy) --------------------------------
def _ref_homogenize(labels, regions, n_regions=MAX_REGIONS):
    labels = np.asarray(labels)
    regions = np.asarray(regions)
    b, h, w = labels.shape
    out = np.empty((b, h, w), np.int32)
    for bi in range(b):
        lab = labels[bi].reshape(-1)
        reg = regions[bi].reshape(-1)
        cn = np.zeros((n_regions, CLASS_NUM), np.float32)
        for p in range(lab.size):
            if lab[p] != IGNORE:
                cn[reg[p], lab[p]] += 1.0
        pix = cn.sum(-1)
        cmax = cn.max(-1)
        arg = cn.argmax(-1)
        ratio = cmax / (pix + 1e-5)
        rid = np.where(ratio < PERCENT, IGNORE, arg).astype(np.int32)
        ref = rid[reg]
        ref = np.where(reg == 0, IGNORE, ref)
        final = np.where(ref == IGNORE, lab, ref)
        out[bi] = final.reshape(h, w)
    return out


if __name__ == "__main__":
    key = jax.random.PRNGKey(0)
    k1, k2, k3 = jax.random.split(key, 3)
    b, h, w = 2, 16, 16

    pseudo_labels = jax.random.randint(k1, (b, h, w), 0, CLASS_NUM, dtype=jnp.int32)
    ign_mask = jax.random.uniform(k3, (b, h, w)) < 0.1
    pseudo_labels = jnp.where(ign_mask, jnp.int32(IGNORE), pseudo_labels)
    regions = jax.random.randint(k2, (b, h, w), 0, MAX_REGIONS, dtype=jnp.int32)

    out = homogenize(pseudo_labels, regions)          # default uint8 output
    out = jax.block_until_ready(out)

    expected = _ref_homogenize(pseudo_labels, regions)
    np.testing.assert_array_equal(np.asarray(out).astype(np.int32), expected)

    print("KERNEL_OK")
</pallas_src>

<mosaic_0001>
module attributes {stable_mosaic.version = 11 : i64} {
  func.func @hist_kernel(%arg0: i32, %arg1: i32, %arg2: memref<1x1x1024xi32, #tpu.memory_space<vmem>>, %arg3: memref<1x1x1024xi32, #tpu.memory_space<vmem>>, %arg4: memref<1x16x1xi32, #tpu.memory_space<vmem>>, %arg5: memref<1x1x1024xi8, #tpu.memory_space<vmem>>, %arg6: memref<1x1x1024xi8, #tpu.memory_space<vmem>>, %arg7: memref<16x6xf32, #tpu.memory_space<vmem>>) attributes {dimension_semantics = [#tpu.dimension_semantics<parallel>, #tpu.dimension_semantics<arbitrary>], iteration_bounds = array<i64: 2, 1>, scalar_prefetch = 0 : i64, scratch_operands = 1 : i64, tpu.core_type = #tpu.core_type<tc>, window_params = [{transform_indices = @transform_0, window_bounds = array<i64: 1, 1, 1024>}, {transform_indices = @transform_1, window_bounds = array<i64: 1, 1, 1024>}, {transform_indices = @transform_2, window_bounds = array<i64: 1, 16, 1>}, {transform_indices = @transform_3, window_bounds = array<i64: 1, 1, 1024>}, {transform_indices = @transform_4, window_bounds = array<i64: 1, 1, 1024>}]} {
    %c0_i32 = arith.constant 0 : i32
    %0 = arith.cmpi eq, %arg1, %c0_i32 : i32
    %1 = arith.extui %0 : i1 to i32
    %c0_i32_0 = arith.constant 0 : i32
    %2 = arith.cmpi ne, %1, %c0_i32_0 : i32
    scf.if %2 {
      %cst_18 = arith.constant 0.000000e+00 : f32
      %34 = vector.broadcast %cst_18 : f32 to vector<16x6xf32>
      %c0_19 = arith.constant 0 : index
      %c0_20 = arith.constant 0 : index
      %35 = vector.load %arg7[%c0_19, %c0_20] : memref<16x6xf32, #tpu.memory_space<vmem>>, vector<16x6xf32>
      tpu.vector_store %arg7[%c0_19, %c0_20], %34 {strides = array<i32>} : memref<16x6xf32, #tpu.memory_space<vmem>>, vector<16x6xf32>,
    } else {
    }
    %c0 = arith.constant 0 : index
    %c0_1 = arith.constant 0 : index
    %c0_2 = arith.constant 0 : index
    %3 = vector.load %arg2[%c0, %c0_1, %c0_2] : memref<1x1x1024xi32, #tpu.memory_space<vmem>>, vector<1x1x1024xi32>
    %4 = vector.shape_cast %3 : vector<1x1x1024xi32> to vector<1x1024xi32>
    %c0_3 = arith.constant 0 : index
    %c0_4 = arith.constant 0 : index
    %c0_5 = arith.constant 0 : index
    %5 = vector.load %arg3[%c0_3, %c0_4, %c0_5] : memref<1x1x1024xi32, #tpu.memory_space<vmem>>, vector<1x1x1024xi32>
    %6 = vector.shape_cast %5 : vector<1x1x1024xi32> to vector<1x1024xi32>
    %7 = arith.trunci %4 : vector<1x1024xi32> to vector<1x1024xi8>
    %c0_6 = arith.constant 0 : index
    %c0_7 = arith.constant 0 : index
    %c0_8 = arith.constant 0 : index
    %8 = vector.load %arg5[%c0_6, %c0_7, %c0_8] : memref<1x1x1024xi8, #tpu.memory_space<vmem>>, vector<1x1x1024xi8>
    %9 = vector.shape_cast %8 : vector<1x1x1024xi8> to vector<1x1024xi8>
    %10 = vector.shape_cast %7 : vector<1x1024xi8> to vector<1x1x1024xi8>
    tpu.vector_store %arg5[%c0_6, %c0_7, %c0_8], %10 {strides = array<i32>} : memref<1x1x1024xi8, #tpu.memory_space<vmem>>, vector<1x1x1024xi8>,
    %11 = arith.trunci %6 : vector<1x1024xi32> to vector<1x1024xi8>
    %c0_9 = arith.constant 0 : index
    %c0_10 = arith.constant 0 : index
    %c0_11 = arith.constant 0 : index
    %12 = vector.load %arg6[%c0_9, %c0_10, %c0_11] : memref<1x1x1024xi8, #tpu.memory_space<vmem>>, vector<1x1x1024xi8>
    %13 = vector.shape_cast %12 : vector<1x1x1024xi8> to vector<1x1024xi8>
    %14 = vector.shape_cast %11 : vector<1x1024xi8> to vector<1x1x1024xi8>
    tpu.vector_store %arg6[%c0_9, %c0_10, %c0_11], %14 {strides = array<i32>} : memref<1x1x1024xi8, #tpu.memory_space<vmem>>, vector<1x1x1024xi8>,
    %15 = tpu.iota {dimensions = array<i32: 0>} : vector<6x1024xi32>
    %16 = vector.broadcast %4 : vector<1x1024xi32> to vector<6x1024xi32>
    %17 = arith.cmpi eq, %16, %15 : vector<6x1024xi32>
    %18 = arith.extui %17 : vector<6x1024xi1> to vector<6x1024xi32>
    %19 = arith.sitofp %18 : vector<6x1024xi32> to vector<6x1024xf32>
    %20 = arith.truncf %19 : vector<6x1024xf32> to vector<6x1024xbf16>
    %21 = tpu.iota {dimensions = array<i32: 0>} : vector<16x1024xi32>
    %22 = vector.broadcast %6 : vector<1x1024xi32> to vector<16x1024xi32>
    %23 = arith.cmpi eq, %22, %21 : vector<16x1024xi32>
    %24 = arith.extui %23 : vector<16x1024xi1> to vector<16x1024xi32>
    %25 = arith.sitofp %24 : vector<16x1024xi32> to vector<16x1024xf32>
    %26 = arith.truncf %25 : vector<16x1024xf32> to vector<16x1024xbf16>
    %c0_12 = arith.constant 0 : index
    %c0_13 = arith.constant 0 : index
    %27 = vector.load %arg7[%c0_12, %c0_13] : memref<16x6xf32, #tpu.memory_space<vmem>>, vector<16x6xf32>
    %cst = arith.constant dense<0.000000e+00> : vector<16x6xf32>
    %28 = tpu.matmul %26, %20, %cst {dimension_numbers = #tpu.dot_dimension_numbers<[1], [1], [0], [0], [0, 0, 1, 0], [], []>} : vector<16x1024xbf16>, vector<6x1024xbf16>, vector<16x6xf32> -> vector<16x6xf32>
    %29 = arith.addf %27, %28 : vector<16x6xf32>
    %c0_14 = arith.constant 0 : index
    %c0_15 = arith.constant 0 : index
    %30 = vector.load %arg7[%c0_14, %c0_15] : memref<16x6xf32, #tpu.memory_space<vmem>>, vector<16x6xf32>
    tpu.vector_store %arg7[%c0_14, %c0_15], %29 {strides = array<i32>} : memref<16x6xf32, #tpu.memory_space<vmem>>, vector<16x6xf32>,
    %c0_i32_16 = arith.constant 0 : i32
    %31 = arith.cmpi eq, %arg1, %c0_i32_16 : i32
    %32 = arith.extui %31 : i1 to i32
    %c0_i32_17 = arith.constant 0 : i32
    %33 = arith.cmpi ne, %32, %c0_i32_17 : i32
    scf.if %33 {
      %c0_18 = arith.constant 0 : index
      %c0_19 = arith.constant 0 : index
      %34 = vector.load %arg7[%c0_18, %c0_19] : memref<16x6xf32, #tpu.memory_space<vmem>>, vector<16x6xf32>
      %cst_20 = arith.constant dense<0.000000e+00> : vector<16xf32>
      %35 = vector.multi_reduction <add>, %34, %cst_20 [1] : vector<16x6xf32> to vector<16xf32>
      %36 = vector.shape_cast %35 : vector<16xf32> to vector<16x1xf32>
      %cst_21 = arith.constant dense<0xFF800000> : vector<16xf32>
      %37 = vector.multi_reduction <maximumf>, %34, %cst_21 [1] : vector<16x6xf32> to vector<16xf32>
      %38 = vector.shape_cast %37 : vector<16xf32> to vector<16x1xf32>
      %39 = tpu.iota {dimensions = array<i32: 1>} : vector<16x6xi32>
      %40 = vector.broadcast %38 : vector<16x1xf32> to vector<16x6xf32>
      %41 = arith.cmpf oeq, %34, %40 : vector<16x6xf32>
      %c6_i32 = arith.constant 6 : i32
      %42 = vector.broadcast %c6_i32 : i32 to vector<16x6xi32>
      %43 = arith.select %41, %39, %42 : vector<16x6xi1>, vector<16x6xi32>
      %cst_22 = arith.constant dense<2147483647> : vector<16xi32>
      %44 = vector.multi_reduction <minsi>, %43, %cst_22 [1] : vector<16x6xi32> to vector<16xi32>
      %45 = vector.shape_cast %44 : vector<16xi32> to vector<16x1xi32>
      %cst_23 = arith.constant 9.99999974E-6 : f32
      %46 = vector.broadcast %cst_23 : f32 to vector<16x1xf32>
      %47 = arith.addf %36, %46 : vector<16x1xf32>
      %48 = arith.divf %38, %47 : vector<16x1xf32>
      %cst_24 = arith.constant 0.899999976 : f32
      %49 = vector.broadcast %cst_24 : f32 to vector<16x1xf32>
      %50 = arith.cmpf olt, %48, %49 : vector<16x1xf32>
      %c255_i32 = arith.constant 255 : i32
      %51 = vector.broadcast %c255_i32 : i32 to vector<16x1xi32>
      %52 = arith.select %50, %51, %45 : vector<16x1xi1>, vector<16x1xi32>
      %c0_25 = arith.constant 0 : index
      %c0_26 = arith.constant 0 : index
      %c0_27 = arith.constant 0 : index
      %53 = vector.load %arg4[%c0_25, %c0_26, %c0_27] : memref<1x16x1xi32, #tpu.memory_space<vmem>>, vector<1x16x1xi32>
      %54 = vector.shape_cast %53 : vector<1x16x1xi32> to vector<16x1xi32>
      %55 = vector.shape_cast %52 : vector<16x1xi32> to vector<1x16x1xi32>
      tpu.vector_store %arg4[%c0_25, %c0_26, %c0_27], %55 {strides = array<i32>} : memref<1x16x1xi32, #tpu.memory_space<vmem>>, vector<1x16x1xi32>,
    } else {
    }
    return
  }
  func.func @transform_0(%arg0: i32, %arg1: i32) -> (i32, i32, i32) {
    %c0_i32 = arith.constant 0 : i32
    %c0_i32_0 = arith.constant 0 : i32
    return %arg0, %c0_i32, %arg1 : i32, i32, i32
  }
  func.func @transform_1(%arg0: i32, %arg1: i32) -> (i32, i32, i32) {
    %c0_i32 = arith.constant 0 : i32
    %c0_i32_0 = arith.constant 0 : i32
    return %arg0, %c0_i32, %arg1 : i32, i32, i32
  }
  func.func @transform_2(%arg0: i32, %arg1: i32) -> (i32, i32, i32) {
    %c0_i32 = arith.constant 0 : i32
    %c0_i32_0 = arith.constant 0 : i32
    %c0_i32_1 = arith.constant 0 : i32
    return %arg0, %c0_i32, %c0_i32_0 : i32, i32, i32
  }
  func.func @transform_3(%arg0: i32, %arg1: i32) -> (i32, i32, i32) {
    %c0_i32 = arith.constant 0 : i32
    %c0_i32_0 = arith.constant 0 : i32
    return %arg0, %c0_i32, %arg1 : i32, i32, i32
  }
  func.func @transform_4(%arg0: i32, %arg1: i32) -> (i32, i32, i32) {
    %c0_i32 = arith.constant 0 : i32
    %c0_i32_0 = arith.constant 0 : i32
    return %arg0, %c0_i32, %arg1 : i32, i32, i32
  }
}

</mosaic_0001>

<llo_original>
// kernel: tpu_custom_call.1
$region0: #{tpu_custom_call.1}
  #allocation0 [shape = 'u32[]', space=smem, size = 0x4, offset = 0x4, fixed_abs, tag = 'smem constant byte address 0x4 - core index']
  #allocation1 [shape = 'u32[144,128]{1,0:T(1,128)}', space=vmem, size = 0x12000, scoped, tag = 'internal scratch']
  #allocation2 [shape = 'f32[16,6]{1,0:T(8,128)}', space=vmem, size = 0x2000, scoped, tag = 'scratch operand']
  %s0 = inlined_call_operand.hbm [shape: s32[2,1,1024], index: 0, kind: input, shape index: {}]
  %s1 = inlined_call_operand.hbm [shape: s32[2,1,1024], index: 1, kind: input, shape index: {}]
  %s2 = inlined_call_operand.vmem [shape: s32[2,16,1], index: 2, kind: output, shape index: {0}]
  %s3 = inlined_call_operand.vmem [shape: u8[2,1,1024], index: 3, kind: output, shape index: {1}]
  %s4 = inlined_call_operand.vmem [shape: u8[2,1,1024], index: 4, kind: output, shape index: {2}]
  %5 = xla_tuple %s2, %s3, %s4
  %s6 = sld [smem:[#allocation0]]
  $region73: #{tpu_custom_call.1} parent=0
    _
  %s8 = ssub.s32 1, %s6
  %s9 = scalar_select 0, %s8, %s6
  $region1: #{tpu_custom_call.1} parent=0
    #allocation3 [shape = 'u8[8192]{0}', space=vmem, size = 0x2000, scoped, tag = 'input window, operand 0']
    #allocation4 [shape = 's32[2]{0}', space=sflag, size = 0x8, scoped, tag = 'scoped memory for tpu_custom_call.1']
    #allocation5 [shape = 'u8[8192]{0}', space=vmem, size = 0x2000, scoped, tag = 'input window, operand 1']
    #allocation6 [shape = 's32[2]{0}', space=sflag, size = 0x8, scoped, tag = 'scoped memory for tpu_custom_call.1']
    %10 = vsyncpa [#allocation4], 0
    %s11 = scalar_lea.sflag [#allocation4], 1
    %12 = vsyncpa %s11, 0
    %13 = vsyncpa [#allocation6], 0
    %s14 = scalar_lea.sflag [#allocation6], 1
    %15 = vsyncpa %s14, 0
    loop: start=0, step=1, limit=4
    $region2: #{tpu_custom_call.1} parent=1 // loop_pre_header
      _
    $region3: #{tpu_custom_call.1} parent=1 // loop_header
      %s17 = sphi 0, %s21
      %p18 = scmp.ge.s32.totalorder %s17, 4
      %s24 = sphi 0, %s36
      %s25 = sphi 0, %s32
      %s26 = sphi 0, %s24
      %s27 = sphi 0, %s25
      %s28 = sphi 0, %s26
      %s29 = sphi 0, %s27
      %s41 = sphi 0, %s43
      %s44 = sphi 0, %s41
      %s45 = sphi 0, %s44
      %s61 = sphi 0, %s45
      %s69 = sphi 0, %s71
      %s72 = sphi 0, %s69
      %s73 = sphi 0, %s72
      %s89 = sphi 0, %s73
      %s95 = sphi 0, %s97
      %s98 = sphi 0, %s95
      %s99 = sphi 0, %s98
      %s115 = sphi 0, %s99
      %s123 = sphi 0, %s125
      %s126 = sphi 0, %s123
      %s127 = sphi 0, %s126
      %s143 = sphi 0, %s127
      %s151 = sphi 0, %s153
      %s154 = sphi 0, %s151
      %s155 = sphi 0, %s154
      %s171 = sphi 0, %s155
    $region4: #{tpu_custom_call.1} parent=1 // loop_header_branch
      %20 = sbr.rel (%p18) target = $region8
    $region5: #{tpu_custom_call.1} parent=1 // loop_body
      %s22 = ssub.s32 %s17, 1
      %s23 = ssub.s32 %s17, 2
      %s30 = sadd.s32 1, %s25
      %p31 = scmp.ge.s32.totalorder %s30, 1
      %s32 = scalar_select %p31, 0, %s30
      %s33 = sadd.s32 1, %s24
      %s34 = scalar_select %p31, %s33, %s24
      %p35 = scmp.ge.s32.totalorder %s34, 2
      %s36 = scalar_select %p35, 0, %s34
      %s37 = ssub.s32 %s24, %s36
      %s38 = ssub.s32 %s25, %s32
      %s39 = sor.u32 %s37, %s38
      %p40 = scmp.eq.s32.totalorder %s39, 0
      %s42 = sadd.s32 %s41, 1
      %s43 = scalar_select %p40, %s41, %s42
      %p46 = pneg %p40
      %p47 = scmp.eq.s32.totalorder %s17, 1
      %p48 = por %p46, %p47
      %p49 = scmp.ne.s32.totalorder %s41, %s44
      %p50 = scmp.eq.s32.totalorder %s17, 0
      %p51 = por %p49, %p50
      %p52 = scmp.ne.s32.totalorder %s41, %s44
      %p53 = scmp.eq.s32.totalorder %s22, 1
      %p54 = por %p52, %p53
      %p55 = scmp.ne.s32.totalorder %s44, %s45
      %p56 = scmp.eq.s32.totalorder %s22, 0
      %p57 = por %p55, %p56
      %p58 = scmp.ne.s32.totalorder %s44, %s45
      %p59 = scmp.eq.s32.totalorder %s23, 1
      %p60 = por %p58, %p59
      %p62 = scmp.ne.s32.totalorder %s45, %s61
      %p63 = scmp.eq.s32.totalorder %s23, 0
      %p64 = por %p62, %p63
      %s65 = ssub.s32 %s24, %s36
      %s66 = ssub.s32 %s25, %s32
      %s67 = sor.u32 %s65, %s66
      %p68 = scmp.eq.s32.totalorder %s67, 0
      %s70 = sadd.s32 %s69, 1
      %s71 = scalar_select %p68, %s69, %s70
      %p74 = pneg %p68
      %p75 = scmp.eq.s32.totalorder %s17, 1
      %p76 = por %p74, %p75
      %p77 = scmp.ne.s32.totalorder %s69, %s72
      %p78 = scmp.eq.s32.totalorder %s17, 0
      %p79 = por %p77, %p78
      %p80 = scmp.ne.s32.totalorder %s69, %s72
      %p81 = scmp.eq.s32.totalorder %s22, 1
      %p82 = por %p80, %p81
      %p83 = scmp.ne.s32.totalorder %s72, %s73
      %p84 = scmp.eq.s32.totalorder %s22, 0
      %p85 = por %p83, %p84
      %p86 = scmp.ne.s32.totalorder %s72, %s73
      %p87 = scmp.eq.s32.totalorder %s23, 1
      %p88 = por %p86, %p87
      %p90 = scmp.ne.s32.totalorder %s73, %s89
      %p91 = scmp.eq.s32.totalorder %s23, 0
      %p92 = por %p90, %p91
      %s93 = ssub.s32 %s24, %s36
      %p94 = scmp.eq.s32.totalorder %s93, 0
      %s96 = sadd.s32 %s95, 1
      %s97 = scalar_select %p94, %s95, %s96
      %p100 = pneg %p94
      %p101 = scmp.eq.s32.totalorder %s17, 1
      %p102 = por %p100, %p101
      %p103 = scmp.ne.s32.totalorder %s95, %s98
      %p104 = scmp.eq.s32.totalorder %s17, 0
      %p105 = por %p103, %p104
      %p106 = scmp.ne.s32.totalorder %s95, %s98
      %p107 = scmp.eq.s32.totalorder %s22, 1
      %p108 = por %p106, %p107
      %p109 = scmp.ne.s32.totalorder %s98, %s99
      %p110 = scmp.eq.s32.totalorder %s22, 0
      %p111 = por %p109, %p110
      %p112 = scmp.ne.s32.totalorder %s98, %s99
      %p113 = scmp.eq.s32.totalorder %s23, 1
      %p114 = por %p112, %p113
      %p116 = scmp.ne.s32.totalorder %s99, %s115
      %p117 = scmp.eq.s32.totalorder %s23, 0
      %p118 = por %p116, %p117
      %s119 = ssub.s32 %s24, %s36
      %s120 = ssub.s32 %s25, %s32
      %s121 = sor.u32 %s119, %s120
      %p122 = scmp.eq.s32.totalorder %s121, 0
      %s124 = sadd.s32 %s123, 1
      %s125 = scalar_select %p122, %s123, %s124
      %p128 = pneg %p122
      %p129 = scmp.eq.s32.totalorder %s17, 1
      %p130 = por %p128, %p129
      %p131 = scmp.ne.s32.totalorder %s123, %s126
      %p132 = scmp.eq.s32.totalorder %s17, 0
      %p133 = por %p131, %p132
      %p134 = scmp.ne.s32.totalorder %s123, %s126
      %p135 = scmp.eq.s32.totalorder %s22, 1
      %p136 = por %p134, %p135
      %p137 = scmp.ne.s32.totalorder %s126, %s127
      %p138 = scmp.eq.s32.totalorder %s22, 0
      %p139 = por %p137, %p138
      %p140 = scmp.ne.s32.totalorder %s126, %s127
      %p141 = scmp.eq.s32.totalorder %s23, 1
      %p142 = por %p140, %p141
      %p144 = scmp.ne.s32.totalorder %s127, %s143
      %p145 = scmp.eq.s32.totalorder %s23, 0
      %p146 = por %p144, %p145
      %s147 = ssub.s32 %s24, %s36
      %s148 = ssub.s32 %s25, %s32
      %s149 = sor.u32 %s147, %s148
      %p150 = scmp.eq.s32.totalorder %s149, 0
      %s152 = sadd.s32 %s151, 1
      %s153 = scalar_select %p150, %s151, %s152
      %p156 = pneg %p150
      %p157 = scmp.eq.s32.totalorder %s17, 1
      %p158 = por %p156, %p157
      %p159 = scmp.ne.s32.totalorder %s151, %s154
      %p160 = scmp.eq.s32.totalorder %s17, 0
      %p161 = por %p159, %p160
      %p162 = scmp.ne.s32.totalorder %s151, %s154
      %p163 = scmp.eq.s32.totalorder %s22, 1
      %p164 = por %p162, %p163
      %p165 = scmp.ne.s32.totalorder %s154, %s155
      %p166 = scmp.eq.s32.totalorder %s22, 0
      %p167 = por %p165, %p166
      %p168 = scmp.ne.s32.totalorder %s154, %s155
      %p169 = scmp.eq.s32.totalorder %s23, 1
      %p170 = por %p168, %p169
      %p172 = scmp.ne.s32.totalorder %s155, %s171
      %p173 = scmp.eq.s32.totalorder %s23, 0
      %p174 = por %p172, %p173
      %p175 = scmp.le.s32.totalorder 1, %s17
      %p176 = scmp.lt.s32.totalorder %s17, 3
      %p177 = pnand %p175, %p176
      %p178 = pneg %p177
      // Predicated region
      $region9: #{tpu_custom_call.1} parent=5 // pred_check
        _
      $region10: #{tpu_custom_call.1} parent=5 // pred_check_branch
        %180 = sbr.rel (%p177) target = $region12
      $region11: #{tpu_custom_call.1} parent=5 // pred_region
        %s181 = ssub.s32 %s17, 1
      $region12: #{tpu_custom_call.1} parent=5 // pred_fallthru
        _
      %p182 = scmp.lt.s32.totalorder %s17, 2
      // Predicated region
      $region13: #{tpu_custom_call.1} parent=5 // pred_check
        %p183 = pneg %p182
      $region14: #{tpu_custom_call.1} parent=5 // pred_check_branch
        %185 = sbr.rel (%p183) target = $region16
      $region15: #{tpu_custom_call.1} parent=5 // pred_region
        // Predicated region
        $region17: #{tpu_custom_call.1} parent=15 // pred_check
          %p186 = pneg %p51
        $region18: #{tpu_custom_call.1} parent=15 // pred_check_branch
          %188 = sbr.rel (%p186) target = $region20
        $region19: #{tpu_custom_call.1} parent=15 // pred_region
          %s189 = sand.u32 %s41, 1
          %s190 = scalar_lea.sflag [#allocation4], %s189
          %s191 = sand.u32 %s41, 1
          %s192 = smul.addr %s191, 8
          %s193 = scalar_lea.vmem [#allocation3], %s192
          %s194 = smul.u32 8, %s25
          %s196 = ssub.s32 128, 128
          %197 = vsyncadd %s190, %s196
          %s198 = smul.addr %s24, 8
          %s199 = sadd.s32 %s194, %s198
          %s200 = smul.addr %s199, 16
          %s201 = scalar_lea.hbm %s0, %s200
          %s203 = sshll.u32 %s193, 4
          %s204 = int_to_ptr.vmem [resolvable:$true] %s203
          %206 = dma.hbm_to_vmem [thread:$0]  %s201, 128, %s204, %s190
        $region20: #{tpu_custom_call.1} parent=15 // pred_fallthru
          _
        // Predicated region
        $region21: #{tpu_custom_call.1} parent=15 // pred_check
          %p207 = pneg %p79
        $region22: #{tpu_custom_call.1} parent=15 // pred_check_branch
          %209 = sbr.rel (%p207) target = $region24
        $region23: #{tpu_custom_call.1} parent=15 // pred_region
          %s210 = sand.u32 %s69, 1
          %s211 = scalar_lea.sflag [#allocation6], %s210
          %s212 = sand.u32 %s69, 1
          %s213 = smul.addr %s212, 8
          %s214 = scalar_lea.vmem [#allocation5], %s213
          %s215 = smul.u32 8, %s25
          %s217 = ssub.s32 128, 128
          %218 = vsyncadd %s211, %s217
          %s219 = smul.addr %s24, 8
          %s220 = sadd.s32 %s215, %s219
          %s221 = smul.addr %s220, 16
          %s222 = scalar_lea.hbm %s1, %s221
          %s224 = sshll.u32 %s214, 4
          %s225 = int_to_ptr.vmem [resolvable:$true] %s224
          %227 = dma.hbm_to_vmem [thread:$0]  %s222, 128, %s225, %s211
        $region24: #{tpu_custom_call.1} parent=15 // pred_fallthru
          _
      $region16: #{tpu_custom_call.1} parent=5 // pred_fallthru
        _
      %p228 = scmp.le.s32.totalorder 1, %s17
      %p229 = scmp.lt.s32.totalorder %s17, 3
      %p230 = pnand %p228, %p229
      %p231 = pneg %p230
      // Predicated region
      $region25: #{tpu_custom_call.1} parent=5 // pred_check
        _
      $region26: #{tpu_custom_call.1} parent=5 // pred_check_branch
        %233 = sbr.rel (%p230) target = $region28
      $region27: #{tpu_custom_call.1} parent=5 // pred_region
        %s234 = ssub.s32 %s17, 1
        %s235 = sand.u32 %s44, 1
        %s236 = scalar_lea.sflag [#allocation4], %s235
        %s237 = sand.u32 %s44, 1
        %s238 = smul.addr %s237, 8
        %s239 = scalar_lea.vmem [#allocation3], %s238
        // Predicated region
        $region29: #{tpu_custom_call.1} parent=27 // pred_check
          %p240 = pneg %p57
        $region30: #{tpu_custom_call.1} parent=27 // pred_check_branch
          %242 = sbr.rel (%p240) target = $region32
        $region31: #{tpu_custom_call.1} parent=27 // pred_region
          %243 = dma.done %s236, 128
        $region32: #{tpu_custom_call.1} parent=27 // pred_fallthru
          _
        %s244 = sand.u32 %s72, 1
        %s245 = scalar_lea.sflag [#allocation6], %s244
        %s246 = sand.u32 %s72, 1
        %s247 = smul.addr %s246, 8
        %s248 = scalar_lea.vmem [#allocation5], %s247
        // Predicated region
        $region33: #{tpu_custom_call.1} parent=27 // pred_check
          %p249 = pneg %p85
        $region34: #{tpu_custom_call.1} parent=27 // pred_check_branch
          %251 = sbr.rel (%p249) target = $region36
        $region35: #{tpu_custom_call.1} parent=27 // pred_region
          %252 = dma.done %s245, 128
        $region36: #{tpu_custom_call.1} parent=27 // pred_fallthru
          _
        %s253 = sand.u32 %s44, 1
        %s254 = scalar_lea.sflag [#allocation4], %s253
        %s255 = sand.u32 %s44, 1
        %s256 = smul.addr %s255, 8
        %s257 = scalar_lea.vmem [#allocation3], %s256
        %p258 = pneg %p57
        %p259 = pneg %p54
        %s260 = sand.u32 %s72, 1
        %s261 = scalar_lea.sflag [#allocation6], %s260
        %s262 = sand.u32 %s72, 1
        %s263 = smul.addr %s262, 8
        %s264 = scalar_lea.vmem [#allocation5], %s263
        %p265 = pneg %p85
        %p266 = pneg %p82
        %p267 = pneg %p111
        %p268 = pneg %p108
        %p269 = scmp.lt.s32.totalorder %s26, 1
        %s270 = scalar_select %p269, %s26, 1
        %s271 = smul.addr %s270, 2
        %s272 = smul.addr %s271, 8
        %s273 = scalar_lea.vmem %s2, %s272
        %p274 = pneg %p139
        %p275 = pneg %p136
        %s276 = smul.u32 8, %s27
        %p277 = scmp.lt.s32.totalorder %s26, 1
        %s278 = scalar_select %p277, %s26, 1
        %p279 = scmp.lt.s32.totalorder %s276, 7
        %s280 = scalar_select %p279, %s276, 7
        %s281 = smul.addr %s278, 8
        %s282 = sadd.s32 %s280, %s281
        %s283 = scalar_lea.vmem %s3, %s282
        %p284 = pneg %p167
        %p285 = pneg %p164
        %s286 = smul.u32 8, %s27
        %p287 = scmp.lt.s32.totalorder %s26, 1
        %s288 = scalar_select %p287, %s26, 1
        %p289 = scmp.lt.s32.totalorder %s286, 7
        %s290 = scalar_select %p289, %s286, 7
        %s291 = smul.addr %s288, 8
        %s292 = sadd.s32 %s290, %s291
        %s293 = scalar_lea.vmem %s4, %s292
        %s294 = smul.u32 8, %s27
        %s295 = smul.u32 8, %s27
        %p296 = scmp.lt.s32.totalorder %s26, 1
        %s297 = scalar_select %p296, %s26, 1
        %s298 = smul.addr %s297, 2
        %s299 = smul.addr %s298, 8
        %s300 = scalar_lea.vmem %s2, %s299
        %s301 = smul.u32 8, %s27
        %p302 = scmp.lt.s32.totalorder %s26, 1
        %s303 = scalar_select %p302, %s26, 1
        %p304 = scmp.lt.s32.totalorder %s301, 7
        %s305 = scalar_select %p304, %s301, 7
        %s306 = smul.addr %s303, 8
        %s307 = sadd.s32 %s305, %s306
        %s308 = scalar_lea.vmem %s3, %s307
        %s309 = smul.u32 8, %s27
        %s310 = smul.u32 8, %s27
        %p311 = scmp.lt.s32.totalorder %s26, 1
        %s312 = scalar_select %p311, %s26, 1
        %p313 = scmp.lt.s32.totalorder %s310, 7
        %s314 = scalar_select %p313, %s310, 7
        %s315 = smul.addr %s312, 8
        %s316 = sadd.s32 %s314, %s315
        %s317 = scalar_lea.vmem %s4, %s316
        %s318 = smul.u32 8, %s27
        %p320 = scmp.eq.s32.totalorder %s27, 0
        // Predicated region
        $region37: #{tpu_custom_call.1} parent=27 // pred_check
          %p321 = pneg %p320
        $region38: #{tpu_custom_call.1} parent=27 // pred_check_branch
          %323 = sbr.rel (%p321) target = $region40
        $region39: #{tpu_custom_call.1} parent=27 // pred_region
          %vm324 = vcmask 48128
          %325 = vst.msk [vmem:[#allocation2] sm:$0xff] %vm324, 0.0
          %326 = vst.msk [vmem:[#allocation2 + $0x8] sm:$0xff] %vm324, 0.0
        $region40: #{tpu_custom_call.1} parent=27 // pred_fallthru
          _
        %v327 = vld [vmem:[%s239] sm:$0xff]
        %v328 = vld [vmem:[%s248] sm:$0xff]
        %v329 = vlaneseq
        %v330 = vshrl.u32 %v329, 7
        %v331 = vsub.s32 0, %v330
        %v332 = vrot.slane %v327, %v331
        %v333 = vlaneseq
        %v334 = vshrl.u32 %v333, 7
        %v335 = vsub.s32 1, %v334
        %v336 = vrot.slane %v327, %v335
        %v337 = vlaneseq
        %v338 = vshrl.u32 %v337, 7
        %v339 = vsub.s32 2, %v338
        %v340 = vrot.slane %v327, %v339
        %v341 = vlaneseq
        %v342 = vshrl.u32 %v341, 7
        %v343 = vsub.s32 3, %v342
        %v344 = vrot.slane %v327, %v343
        %v345 = vlaneseq
        %v346 = vshrl.u32 %v345, 7
        %v347 = vsub.s32 4, %v346
        %v348 = vrot.slane %v327, %v347
        %v349 = vlaneseq
        %v350 = vshrl.u32 %v349, 7
        %v351 = vsub.s32 5, %v350
        %v352 = vrot.slane %v327, %v351
        %v353 = vlaneseq
        %v354 = vshrl.u32 %v353, 7
        %v355 = vsub.s32 6, %v354
        %v356 = vrot.slane %v327, %v355
        %v357 = vlaneseq
        %v358 = vshrl.u32 %v357, 7
        %v359 = vsub.s32 7, %v358
        %v360 = vrot.slane %v327, %v359
        %v361 = vpack.c.b16 %v332, %v332
        %v362 = vpack.c.b8 %v361, %v361
        %v363 = vpack.c.b16 %v336, %v336
        %v364 = vpack.c.b8 %v363, %v363
        %v365 = vpack.c.b16 %v340, %v340
        %v366 = vpack.c.b8 %v365, %v365
        %v367 = vpack.c.b16 %v344, %v344
        %v368 = vpack.c.b8 %v367, %v367
        %v369 = vpack.c.b16 %v348, %v348
        %v370 = vpack.c.b8 %v369, %v369
        %v371 = vpack.c.b16 %v352, %v352
        %v372 = vpack.c.b8 %v371, %v371
        %v373 = vpack.c.b16 %v356, %v356
        %v374 = vpack.c.b8 %v373, %v373
        %v375 = vpack.c.b16 %v360, %v360
        %v376 = vpack.c.b8 %v375, %v375
        %v377 = vcombine.low %v362, %v364
        %v378 = vcombine.low %v366, %v368
        %v379 = vcombine.low %v370, %v372
        %v380 = vcombine.low %v374, %v376
        %v382 = vunpack.c.l.s4 1966171168
        %v383 = vunpack.c.0.s8 %v382
        %v384 = vlaneseq
        %v385 = vshrl.u32 %v384, 7
        %v386 = vsub.s32 %v383, %v385
        %v387 = vrot.slane %v377, %v386
        %v389 = vunpack.c.l.s4 1966171168
        %v390 = vunpack.c.0.s8 %v389
        %v391 = vlaneseq
        %v392 = vshrl.u32 %v391, 7
        %v393 = vsub.s32 %v390, %v392
        %v394 = vrot.slane %v378, %v393
        %v396 = vunpack.c.l.s4 1966171168
        %v397 = vunpack.c.0.s8 %v396
        %v398 = vlaneseq
        %v399 = vshrl.u32 %v398, 7
        %v400 = vsub.s32 %v397, %v399
        %v401 = vrot.slane %v379, %v400
        %v403 = vunpack.c.l.s4 1966171168
        %v404 = vunpack.c.0.s8 %v403
        %v405 = vlaneseq
        %v406 = vshrl.u32 %v405, 7
        %v407 = vsub.s32 %v404, %v406
        %v408 = vrot.slane %v380, %v407
        %v409 = vcombine.low %v387, %v394
        %v410 = vcombine.low %v401, %v408
        %v412 = vunpack.c.l.s4 1966171168
        %v413 = vunpack.c.0.s8 %v412
        %v414 = vlaneseq
        %v415 = vshrl.u32 %v414, 7
        %v416 = vsub.s32 %v413, %v415
        %v417 = vrot.slane %v409, %v416
        %v419 = vunpack.c.l.s4 1966171168
        %v420 = vunpack.c.0.s8 %v419
        %v421 = vlaneseq
        %v422 = vshrl.u32 %v421, 7
        %v423 = vsub.s32 %v420, %v422
        %v424 = vrot.slane %v410, %v423
        %v425 = vcombine.low %v417, %v424
        %vm426 = vcmask 1040384
        %vm427 = vsmask.f32 0
        %vm428 = vmand %vm426, %vm427
        %vm429 = vcmask 1041409
        %vm430 = vsmask.f32 1024
        %vm431 = vmand %vm429, %vm430
        %vm432 = vmor %vm431, %vm428
        %vm433 = vcmask 1042434
        %vm434 = vsmask.f32 2048
        %vm435 = vmand %vm433, %vm434
        %vm436 = vmor %vm435, %vm432
        %vm437 = vcmask 1043459
        %vm438 = vsmask.f32 3072
        %vm439 = vmand %vm437, %vm438
        %vm440 = vmor %vm439, %vm436
        %vm441 = vcmask 1044484
        %vm442 = vsmask.f32 4096
        %vm443 = vmand %vm441, %vm442
        %vm444 = vmor %vm443, %vm440
        %vm445 = vcmask 1045509
        %vm446 = vsmask.f32 5120
        %vm447 = vmand %vm445, %vm446
        %vm448 = vmor %vm447, %vm444
        %vm449 = vcmask 1046534
        %vm450 = vsmask.f32 6144
        %vm451 = vmand %vm449, %vm450
        %vm452 = vmor %vm451, %vm448
        %vm453 = vcmask 1047559
        %vm454 = vsmask.f32 7168
        %vm455 = vmand %vm453, %vm454
        %vm456 = vmor %vm455, %vm452
        %v457 = vld [vmem:[%s308] sm:$0xff]
        %v458 = vsel %vm456, %v425, %v457
        %459 = vst [vmem:[%s308] sm:$0xff] %v458
        %v460 = vlaneseq
        %v461 = vshrl.u32 %v460, 7
        %v462 = vsub.s32 0, %v461
        %v463 = vrot.slane %v328, %v462
        %v464 = vlaneseq
        %v465 = vshrl.u32 %v464, 7
        %v466 = vsub.s32 1, %v465
        %v467 = vrot.slane %v328, %v466
        %v468 = vlaneseq
        %v469 = vshrl.u32 %v468, 7
        %v470 = vsub.s32 2, %v469
        %v471 = vrot.slane %v328, %v470
        %v472 = vlaneseq
        %v473 = vshrl.u32 %v472, 7
        %v474 = vsub.s32 3, %v473
        %v475 = vrot.slane %v328, %v474
        %v476 = vlaneseq
        %v477 = vshrl.u32 %v476, 7
        %v478 = vsub.s32 4, %v477
        %v479 = vrot.slane %v328, %v478
        %v480 = vlaneseq
        %v481 = vshrl.u32 %v480, 7
        %v482 = vsub.s32 5, %v481
        %v483 = vrot.slane %v328, %v482
        %v484 = vlaneseq
        %v485 = vshrl.u32 %v484, 7
        %v486 = vsub.s32 6, %v485
        %v487 = vrot.slane %v328, %v486
        %v488 = vlaneseq
        %v489 = vshrl.u32 %v488, 7
        %v490 = vsub.s32 7, %v489
        %v491 = vrot.slane %v328, %v490
        %v492 = vpack.c.b16 %v463, %v463
        %v493 = vpack.c.b8 %v492, %v492
        %v494 = vpack.c.b16 %v467, %v467
        %v495 = vpack.c.b8 %v494, %v494
        %v496 = vpack.c.b16 %v471, %v471
        %v497 = vpack.c.b8 %v496, %v496
        %v498 = vpack.c.b16 %v475, %v475
        %v499 = vpack.c.b8 %v498, %v498
        %v500 = vpack.c.b16 %v479, %v479
        %v501 = vpack.c.b8 %v500, %v500
        %v502 = vpack.c.b16 %v483, %v483
        %v503 = vpack.c.b8 %v502, %v502
        %v504 = vpack.c.b16 %v487, %v487
        %v505 = vpack.c.b8 %v504, %v504
        %v506 = vpack.c.b16 %v491, %v491
        %v507 = vpack.c.b8 %v506, %v506
        %v508 = vcombine.low %v493, %v495
        %v509 = vcombine.low %v497, %v499
        %v510 = vcombine.low %v501, %v503
        %v511 = vcombine.low %v505, %v507
        %v513 = vunpack.c.l.s4 1966171168
        %v514 = vunpack.c.0.s8 %v513
        %v515 = vlaneseq
        %v516 = vshrl.u32 %v515, 7
        %v517 = vsub.s32 %v514, %v516
        %v518 = vrot.slane %v508, %v517
        %v520 = vunpack.c.l.s4 1966171168
        %v521 = vunpack.c.0.s8 %v520
        %v522 = vlaneseq
        %v523 = vshrl.u32 %v522, 7
        %v524 = vsub.s32 %v521, %v523
        %v525 = vrot.slane %v509, %v524
        %v527 = vunpack.c.l.s4 1966171168
        %v528 = vunpack.c.0.s8 %v527
        %v529 = vlaneseq
        %v530 = vshrl.u32 %v529, 7
        %v531 = vsub.s32 %v528, %v530
        %v532 = vrot.slane %v510, %v531
        %v534 = vunpack.c.l.s4 1966171168
        %v535 = vunpack.c.0.s8 %v534
        %v536 = vlaneseq
        %v537 = vshrl.u32 %v536, 7
        %v538 = vsub.s32 %v535, %v537
        %v539 = vrot.slane %v511, %v538
        %v540 = vcombine.low %v518, %v525
        %v541 = vcombine.low %v532, %v539
        %v543 = vunpack.c.l.s4 1966171168
        %v544 = vunpack.c.0.s8 %v543
        %v545 = vlaneseq
        %v546 = vshrl.u32 %v545, 7
        %v547 = vsub.s32 %v544, %v546
        %v548 = vrot.slane %v540, %v547
        %v550 = vunpack.c.l.s4 1966171168
        %v551 = vunpack.c.0.s8 %v550
        %v552 = vlaneseq
        %v553 = vshrl.u32 %v552, 7
        %v554 = vsub.s32 %v551, %v553
        %v555 = vrot.slane %v541, %v554
        %v556 = vcombine.low %v548, %v555
        %v557 = vld [vmem:[%s317] sm:$0xff]
        %v558 = vsel %vm456, %v556, %v557
        %559 = vst [vmem:[%s317] sm:$0xff] %v558
        %v560 = vlaneseq
        %v561 = vshrl.u32 %v560, 7
        %vm562 = vcmp.eq.s32.totalorder %v332, %v561
        %vm563 = vcmp.eq.s32.totalorder %v336, %v561
        %vm564 = vcmp.eq.s32.totalorder %v340, %v561
        %vm565 = vcmp.eq.s32.totalorder %v344, %v561
        %vm566 = vcmp.eq.s32.totalorder %v348, %v561
        %vm567 = vcmp.eq.s32.totalorder %v352, %v561
        %vm568 = vcmp.eq.s32.totalorder %v356, %v561
        %vm569 = vcmp.eq.s32.totalorder %v360, %v561
        %v570 = vsel %vm562, 1, 0
        %v571 = vsel %vm563, 1, 0
        %v572 = vsel %vm564, 1, 0
        %v573 = vsel %vm565, 1, 0
        %v574 = vsel %vm566, 1, 0
        %v575 = vsel %vm567, 1, 0
        %v576 = vsel %vm568, 1, 0
        %v577 = vsel %vm569, 1, 0
        %v578 = vcvt.s32.f32 %v570
        %v579 = vcvt.s32.f32 %v571
        %v580 = vcvt.s32.f32 %v572
        %v581 = vcvt.s32.f32 %v573
        %v582 = vcvt.s32.f32 %v574
        %v583 = vcvt.s32.f32 %v575
        %v584 = vcvt.s32.f32 %v576
        %v585 = vcvt.s32.f32 %v577
        %v586 = vpack.c.bf16 %v578, %v578
        %v587 = vpack.c.bf16 %v579, %v579
        %v588 = vpack.c.bf16 %v580, %v580
        %v589 = vpack.c.bf16 %v581, %v581
        %v590 = vpack.c.bf16 %v582, %v582
        %v591 = vpack.c.bf16 %v583, %v583
        %v592 = vpack.c.bf16 %v584, %v584
        %v593 = vpack.c.bf16 %v585, %v585
        %v594 = vadd.s32 %v561, 8
        %vm595 = vcmp.eq.s32.totalorder %v463, %v561
        %vm596 = vcmp.eq.s32.totalorder %v467, %v561
        %vm597 = vcmp.eq.s32.totalorder %v471, %v561
        %vm598 = vcmp.eq.s32.totalorder %v475, %v561
        %vm599 = vcmp.eq.s32.totalorder %v479, %v561
        %vm600 = vcmp.eq.s32.totalorder %v483, %v561
        %vm601 = vcmp.eq.s32.totalorder %v487, %v561
        %vm602 = vcmp.eq.s32.totalorder %v491, %v561
        %vm603 = vcmp.eq.s32.totalorder %v463, %v594
        %vm604 = vcmp.eq.s32.totalorder %v467, %v594
        %vm605 = vcmp.eq.s32.totalorder %v471, %v594
        %vm606 = vcmp.eq.s32.totalorder %v475, %v594
        %vm607 = vcmp.eq.s32.totalorder %v479, %v594
        %vm608 = vcmp.eq.s32.totalorder %v483, %v594
        %vm609 = vcmp.eq.s32.totalorder %v487, %v594
        %vm610 = vcmp.eq.s32.totalorder %v491, %v594
        %v611 = vsel %vm595, 1, 0
        %v612 = vsel %vm596, 1, 0
        %v613 = vsel %vm597, 1, 0
        %v614 = vsel %vm598, 1, 0
        %v615 = vsel %vm599, 1, 0
        %v616 = vsel %vm600, 1, 0
        %v617 = vsel %vm601, 1, 0
        %v618 = vsel %vm602, 1, 0
        %v619 = vsel %vm603, 1, 0
        %v620 = vsel %vm604, 1, 0
        %v621 = vsel %vm605, 1, 0
        %v622 = vsel %vm606, 1, 0
        %v623 = vsel %vm607, 1, 0
        %v624 = vsel %vm608, 1, 0
        %v625 = vsel %vm609, 1, 0
        %v626 = vsel %vm610, 1, 0
        %v627 = vcvt.s32.f32 %v611
        %v628 = vcvt.s32.f32 %v612
        %v629 = vcvt.s32.f32 %v613
        %v630 = vcvt.s32.f32 %v614
        %v631 = vcvt.s32.f32 %v615
        %v632 = vcvt.s32.f32 %v616
        %v633 = vcvt.s32.f32 %v617
        %v634 = vcvt.s32.f32 %v618
        %v635 = vcvt.s32.f32 %v619
        %v636 = vcvt.s32.f32 %v620
        %v637 = vcvt.s32.f32 %v621
        %v638 = vcvt.s32.f32 %v622
        %v639 = vcvt.s32.f32 %v623
        %v640 = vcvt.s32.f32 %v624
        %v641 = vcvt.s32.f32 %v625
        %v642 = vcvt.s32.f32 %v626
        %v643 = vpack.c.bf16 %v635, %v627
        %v644 = vpack.c.bf16 %v636, %v628
        %v645 = vpack.c.bf16 %v637, %v629
        %v646 = vpack.c.bf16 %v638, %v630
        %v647 = vpack.c.bf16 %v639, %v631
        %v648 = vpack.c.bf16 %v640, %v632
        %v649 = vpack.c.bf16 %v641, %v633
        %v650 = vpack.c.bf16 %v642, %v634
        %v651 = vld [vmem:[#allocation2] sm:$0xff]
        %v652 = vld [vmem:[#allocation2 + $0x8] sm:$0xff]
        %653 = vmatprep.subr.bf16.mxu0 %v587
        %654 = vmatpush1.bf16.xpose.msra.mxu0 %v586
        %655 = vmatprep.subr.bf16.mxu0 0
        %656 = vmatpush1.bf16.xpose.msra.mxu0 0
        %657 = vmatprep.subr.bf16.mxu0 0
        %658 = vmatpush1.bf16.xpose.msra.mxu0 0
        %659 = vmatprep.subr.bf16.mxu0 0
        %660 = vmatpush1.bf16.xpose.msra.mxu0 0
        %661 = vmatprep.subr.bf16.mxu0 0
        %662 = vmatpush1.bf16.xpose.msra.mxu0 0
        %663 = vmatprep.subr.bf16.mxu0 0
        %664 = vmatpush1.bf16.xpose.msra.mxu0 0
        %665 = vmatprep.subr.bf16.mxu0 0
        %666 = vmatpush1.bf16.xpose.msra.mxu0 0
        %667 = vmatprep.subr.bf16.mxu0 0
        %668 = vmatpush1.bf16.xpose.msra.mxu0 0
        %669 = vmatprep.subr.bf16.mxu0 0
        %670 = vmatpush1.bf16.xpose.msra.mxu0 0
        %671 = vmatprep.subr.bf16.mxu0 0
        %672 = vmatpush1.bf16.xpose.msra.mxu0 0
        %673 = vmatprep.subr.bf16.mxu0 0
        %674 = vmatpush1.bf16.xpose.msra.mxu0 0
        %675 = vmatprep.subr.bf16.mxu0 0
        %676 = vmatpush1.bf16.xpose.msra.mxu0 0
        %677 = vmatprep.subr.bf16.mxu0 0
        %678 = vmatpush1.bf16.xpose.msra.mxu0 0
        %679 = vmatprep.subr.bf16.mxu0 0
        %680 = vmatpush1.bf16.xpose.msra.mxu0 0
        %681 = vmatprep.subr.bf16.mxu0 0
        %682 = vmatpush1.bf16.xpose.msra.mxu0 0
        %683 = vmatprep.subr.bf16.mxu0 0
        %684 = vmatpush1.bf16.xpose.msra.mxu0 0
        %685 = vmatprep.mubr.bf16.mxu0 %v644
        %686 = vmatmul.mubr.bf16.gmra.mrb[0].mxu0 %v643
        %v687 = vpop.f32.mrb[0].mxu0
        %v688 = vadd.f32 0.0, %v687
        %v689 = vpop.f32.mrb[0].mxu0
        %v690 = vpop.f32.mrb[0].mxu0
        %v691 = vadd.f32 0.0, %v690
        %v692 = vpop.f32.mrb[0].mxu0
        %693 = vdwg.mxu0
        %694 = vmatprep.subr.bf16.mxu0 %v589
        %695 = vmatpush1.bf16.xpose.msra.mxu0 %v588
        %696 = vmatprep.subr.bf16.mxu0 0
        %697 = vmatpush1.bf16.xpose.msra.mxu0 0
        %698 = vmatprep.subr.bf16.mxu0 0
        %699 = vmatpush1.bf16.xpose.msra.mxu0 0
        %700 = vmatprep.subr.bf16.mxu0 0
        %701 = vmatpush1.bf16.xpose.msra.mxu0 0
        %702 = vmatprep.subr.bf16.mxu0 0
        %703 = vmatpush1.bf16.xpose.msra.mxu0 0
        %704 = vmatprep.subr.bf16.mxu0 0
        %705 = vmatpush1.bf16.xpose.msra.mxu0 0
        %706 = vmatprep.subr.bf16.mxu0 0
        %707 = vmatpush1.bf16.xpose.msra.mxu0 0
        %708 = vmatprep.subr.bf16.mxu0 0
        %709 = vmatpush1.bf16.xpose.msra.mxu0 0
        %710 = vmatprep.subr.bf16.mxu0 0
        %711 = vmatpush1.bf16.xpose.msra.mxu0 0
        %712 = vmatprep.subr.bf16.mxu0 0
        %713 = vmatpush1.bf16.xpose.msra.mxu0 0
        %714 = vmatprep.subr.bf16.mxu0 0
        %715 = vmatpush1.bf16.xpose.msra.mxu0 0
        %716 = vmatprep.subr.bf16.mxu0 0
        %717 = vmatpush1.bf16.xpose.msra.mxu0 0
        %718 = vmatprep.subr.bf16.mxu0 0
        %719 = vmatpush1.bf16.xpose.msra.mxu0 0
        %720 = vmatprep.subr.bf16.mxu0 0
        %721 = vmatpush1.bf16.xpose.msra.mxu0 0
        %722 = vmatprep.subr.bf16.mxu0 0
        %723 = vmatpush1.bf16.xpose.msra.mxu0 0
        %724 = vmatprep.subr.bf16.mxu0 0
        %725 = vmatpush1.bf16.xpose.msra.mxu0 0
        %726 = vmatprep.mubr.bf16.mxu0 %v646
        %727 = vmatmul.mubr.bf16.gmra.mrb[0].mxu0 %v645
        %v728 = vpop.f32.mrb[0].mxu0
        %v729 = vadd.f32 %v688, %v728
        %v730 = vpop.f32.mrb[0].mxu0
        %v731 = vpop.f32.mrb[0].mxu0
        %v732 = vadd.f32 %v691, %v731
        %v733 = vpop.f32.mrb[0].mxu0
        %734 = vdwg.mxu0
        %735 = vmatprep.subr.bf16.mxu0 %v591
        %736 = vmatpush1.bf16.xpose.msra.mxu0 %v590
        %737 = vmatprep.subr.bf16.mxu0 0
        %738 = vmatpush1.bf16.xpose.msra.mxu0 0
        %739 = vmatprep.subr.bf16.mxu0 0
        %740 = vmatpush1.bf16.xpose.msra.mxu0 0
        %741 = vmatprep.subr.bf16.mxu0 0
        %742 = vmatpush1.bf16.xpose.msra.mxu0 0
        %743 = vmatprep.subr.bf16.mxu0 0
        %744 = vmatpush1.bf16.xpose.msra.mxu0 0
        %745 = vmatprep.subr.bf16.mxu0 0
        %746 = vmatpush1.bf16.xpose.msra.mxu0 0
        %747 = vmatprep.subr.bf16.mxu0 0
        %748 = vmatpush1.bf16.xpose.msra.mxu0 0
        %749 = vmatprep.subr.bf16.mxu0 0
        %750 = vmatpush1.bf16.xpose.msra.mxu0 0
        %751 = vmatprep.subr.bf16.mxu0 0
        %752 = vmatpush1.bf16.xpose.msra.mxu0 0
        %753 = vmatprep.subr.bf16.mxu0 0
        %754 = vmatpush1.bf16.xpose.msra.mxu0 0
        %755 = vmatprep.subr.bf16.mxu0 0
        %756 = vmatpush1.bf16.xpose.msra.mxu0 0
        %757 = vmatprep.subr.bf16.mxu0 0
        %758 = vmatpush1.bf16.xpose.msra.mxu0 0
        %759 = vmatprep.subr.bf16.mxu0 0
        %760 = vmatpush1.bf16.xpose.msra.mxu0 0
        %761 = vmatprep.subr.bf16.mxu0 0
        %762 = vmatpush1.bf16.xpose.msra.mxu0 0
        %763 = vmatprep.subr.bf16.mxu0 0
        %764 = vmatpush1.bf16.xpose.msra.mxu0 0
        %765 = vmatprep.subr.bf16.mxu0 0
        %766 = vmatpush1.bf16.xpose.msra.mxu0 0
        %767 = vmatprep.mubr.bf16.mxu0 %v648
        %768 = vmatmul.mubr.bf16.gmra.mrb[0].mxu0 %v647
        %v769 = vpop.f32.mrb[0].mxu0
        %v770 = vadd.f32 %v729, %v769
        %v771 = vpop.f32.mrb[0].mxu0
        %v772 = vpop.f32.mrb[0].mxu0
        %v773 = vadd.f32 %v732, %v772
        %v774 = vpop.f32.mrb[0].mxu0
        %775 = vdwg.mxu0
        %776 = vmatprep.subr.bf16.mxu0 %v593
        %777 = vmatpush1.bf16.xpose.msra.mxu0 %v592
        %778 = vmatprep.subr.bf16.mxu0 0
        %779 = vmatpush1.bf16.xpose.msra.mxu0 0
        %780 = vmatprep.subr.bf16.mxu0 0
        %781 = vmatpush1.bf16.xpose.msra.mxu0 0
        %782 = vmatprep.subr.bf16.mxu0 0
        %783 = vmatpush1.bf16.xpose.msra.mxu0 0
        %784 = vmatprep.subr.bf16.mxu0 0
        %785 = vmatpush1.bf16.xpose.msra.mxu0 0
        %786 = vmatprep.subr.bf16.mxu0 0
        %787 = vmatpush1.bf16.xpose.msra.mxu0 0
        %788 = vmatprep.subr.bf16.mxu0 0
        %789 = vmatpush1.bf16.xpose.msra.mxu0 0
        %790 = vmatprep.subr.bf16.mxu0 0
        %791 = vmatpush1.bf16.xpose.msra.mxu0 0
        %792 = vmatprep.subr.bf16.mxu0 0
        %793 = vmatpush1.bf16.xpose.msra.mxu0 0
        %794 = vmatprep.subr.bf16.mxu0 0
        %795 = vmatpush1.bf16.xpose.msra.mxu0 0
        %796 = vmatprep.subr.bf16.mxu0 0
        %797 = vmatpush1.bf16.xpose.msra.mxu0 0
        %798 = vmatprep.subr.bf16.mxu0 0
        %799 = vmatpush1.bf16.xpose.msra.mxu0 0
        %800 = vmatprep.subr.bf16.mxu0 0
        %801 = vmatpush1.bf16.xpose.msra.mxu0 0
        %802 = vmatprep.subr.bf16.mxu0 0
        %803 = vmatpush1.bf16.xpose.msra.mxu0 0
        %804 = vmatprep.subr.bf16.mxu0 0
        %805 = vmatpush1.bf16.xpose.msra.mxu0 0
        %806 = vmatprep.subr.bf16.mxu0 0
        %807 = vmatpush1.bf16.xpose.msra.mxu0 0
        %808 = vmatprep.mubr.bf16.mxu0 %v650
        %809 = vmatmul.mubr.bf16.gmra.mrb[0].mxu0 %v649
        %v810 = vpop.f32.mrb[0].mxu0
        %v811 = vadd.f32 %v770, %v810
        %v812 = vpop.f32.mrb[0].mxu0
        %v813 = vpop.f32.mrb[0].mxu0
        %v814 = vadd.f32 %v773, %v813
        %v815 = vpop.f32.mrb[0].mxu0
        %816 = vdwg.mxu0
        %v817 = vadd.f32 %v651, %v811
        %v818 = vadd.f32 %v652, %v814
        %vm819 = vcmask 48128
        %820 = vst.msk [vmem:[#allocation2] sm:$0xff] %vm819, %v817
        %821 = vst.msk [vmem:[#allocation2 + $0x8] sm:$0xff] %vm819, %v818
        // Predicated region
        $region41: #{tpu_custom_call.1} parent=27 // pred_check
          %p822 = pneg %p320
        $region42: #{tpu_custom_call.1} parent=27 // pred_check_branch
          %824 = sbr.rel (%p822) target = $region44
        $region43: #{tpu_custom_call.1} parent=27 // pred_region
          %v825 = vld [vmem:[#allocation2] sm:$0xff]
          %v826 = vld [vmem:[#allocation2 + $0x8] sm:$0xff]
          %v827 = vsel %vm819, %v825, 0.0
          %828 = vadd.xlane.f32.xlu0 %v827
          %v829 = vpop.xlane.xlu0 %828
          %v830 = vsel %vm819, %v826, 0.0
          %831 = vadd.xlane.f32.xlu0 %v830
          %v832 = vpop.xlane.xlu0 %831
          %v833 = vsel %vm819, %v825, -inf
          %834 = vmax.xlane.f32.xlu0 %v833
          %v835 = vpop.xlane.xlu0 %834
          %v836 = vsel %vm819, %v826, -inf
          %837 = vmax.xlane.f32.xlu0 %v836
          %v838 = vpop.xlane.xlu0 %837
          %v839 = vlaneseq
          %v840 = vand.u32 %v839, 127
          %vm841 = vcmp.eq.f32.partialorder %v825, %v835
          %vm842 = vcmp.eq.f32.partialorder %v826, %v838
          %v843 = vsel %vm841, %v840, 6
          %v844 = vsel %vm842, %v840, 6
          %v845 = vsel %vm819, %v843, 2147483647
          %v846 = vand.u32 %v845, 65535
          %v847 = vshra.s32 %v845, 16
          %v848 = vcvt.s32.f32 %v846
          %v849 = vcvt.s32.f32 %v847
          %850 = vmin.xlane.f32.xlu0 %v849
          %v851 = vpop.xlane.xlu0 %850
          %vm852 = vcmp.eq.f32.partialorder %v849, %v851
          %v853 = vsel %vm852, %v848, inf
          %854 = vmin.xlane.f32.xlu0 %v853
          %v855 = vpop.xlane.xlu0 %854
          %v856 = vcvt.f32.s32 %v855
          %v857 = vcvt.f32.s32 %v851
          %v858 = vshll.u32 %v857, 16
          %v859 = vadd.s32 %v858, %v856
          %v860 = vsel %vm819, %v844, 2147483647
          %v861 = vand.u32 %v860, 65535
          %v862 = vshra.s32 %v860, 16
          %v863 = vcvt.s32.f32 %v861
          %v864 = vcvt.s32.f32 %v862
          %865 = vmin.xlane.f32.xlu0 %v864
          %v866 = vpop.xlane.xlu0 %865
          %vm867 = vcmp.eq.f32.partialorder %v864, %v866
          %v868 = vsel %vm867, %v863, inf
          %869 = vmin.xlane.f32.xlu0 %v868
          %v870 = vpop.xlane.xlu0 %869
          %v871 = vcvt.f32.s32 %v870
          %v872 = vcvt.f32.s32 %v866
          %v873 = vshll.u32 %v872, 16
          %v874 = vadd.s32 %v873, %v871
          %v875 = vadd.f32 %v829, 1e-05
          %v876 = vadd.f32 %v832, 1e-05
          %v877 = vrcp.pop %v875
          %v878 = vmul.f32 %v835, %v877
          %v879 = vrcp.pop %v876
          %v880 = vmul.f32 %v838, %v879
          %vm881 = vcmp.lt.f32.partialorder %v878, 0.9
          %vm882 = vcmp.lt.f32.partialorder %v880, 0.9
          %v883 = vsel %vm881, 255, %v859
          %v884 = vsel %vm882, 255, %v874
          %vm885 = vcmask 7168
          %886 = vst.msk [vmem:[%s300] sm:$0xff] %vm885, %v883
          %887 = vst.msk [vmem:[%s300 + $0x8] sm:$0xff] %vm885, %v884
        $region44: #{tpu_custom_call.1} parent=27 // pred_fallthru
          _
        %p888 = scmp.lt.s32.totalorder %s26, 1
        %s889 = scalar_select %p888, %s26, 1
        %s890 = smul.addr %s889, 2
        %s891 = smul.addr %s890, 8
        %s892 = scalar_lea.vmem %s2, %s891
        %s893 = smul.u32 8, %s27
        %p894 = scmp.lt.s32.totalorder %s26, 1
        %s895 = scalar_select %p894, %s26, 1
        %p896 = scmp.lt.s32.totalorder %s893, 7
        %s897 = scalar_select %p896, %s893, 7
        %s898 = smul.addr %s895, 8
        %s899 = sadd.s32 %s897, %s898
        %s900 = scalar_lea.vmem %s3, %s899
        %s901 = smul.u32 8, %s27
        %p902 = scmp.lt.s32.totalorder %s26, 1
        %s903 = scalar_select %p902, %s26, 1
        %p904 = scmp.lt.s32.totalorder %s901, 7
        %s905 = scalar_select %p904, %s901, 7
        %s906 = smul.addr %s903, 8
        %s907 = sadd.s32 %s905, %s906
        %s908 = scalar_lea.vmem %s4, %s907
        // Predicated region
        $region45: #{tpu_custom_call.1} parent=27 // pred_check
          %p909 = pneg %p108
        $region46: #{tpu_custom_call.1} parent=27 // pred_check_branch
          %911 = sbr.rel (%p909) target = $region48
        $region47: #{tpu_custom_call.1} parent=27 // pred_region
          _
        $region48: #{tpu_custom_call.1} parent=27 // pred_fallthru
          _
        // Predicated region
        $region49: #{tpu_custom_call.1} parent=27 // pred_check
          %p912 = pneg %p136
        $region50: #{tpu_custom_call.1} parent=27 // pred_check_branch
          %914 = sbr.rel (%p912) target = $region52
        $region51: #{tpu_custom_call.1} parent=27 // pred_region
          %s915 = smul.u32 8, %s27
        $region52: #{tpu_custom_call.1} parent=27 // pred_fallthru
          _
        // Predicated region
        $region53: #{tpu_custom_call.1} parent=27 // pred_check
          %p916 = pneg %p164
        $region54: #{tpu_custom_call.1} parent=27 // pred_check_branch
          %918 = sbr.rel (%p916) target = $region56
        $region55: #{tpu_custom_call.1} parent=27 // pred_region
          %s919 = smul.u32 8, %s27
        $region56: #{tpu_custom_call.1} parent=27 // pred_fallthru
          _
      $region28: #{tpu_custom_call.1} parent=5 // pred_fallthru
        _
      %p920 = scmp.le.s32.totalorder 2, %s17
      // Predicated region
      $region57: #{tpu_custom_call.1} parent=5 // pred_check
        %p921 = pneg %p920
      $region58: #{tpu_custom_call.1} parent=5 // pred_check_branch
        %923 = sbr.rel (%p921) target = $region60
      $region59: #{tpu_custom_call.1} parent=5 // pred_region
        %s924 = ssub.s32 %s17, 2
        // Predicated region
        $region61: #{tpu_custom_call.1} parent=59 // pred_check
          %p925 = pneg %p114
        $region62: #{tpu_custom_call.1} parent=59 // pred_check_branch
          %927 = sbr.rel (%p925) target = $region64
        $region63: #{tpu_custom_call.1} parent=59 // pred_region
          %p928 = scmp.lt.s32.totalorder %s28, 1
          %s929 = scalar_select %p928, %s28, 1
          %s930 = smul.addr %s929, 2
          %s931 = smul.addr %s930, 8
          %s932 = scalar_lea.vmem %s2, %s931
        $region64: #{tpu_custom_call.1} parent=59 // pred_fallthru
          _
        // Predicated region
        $region65: #{tpu_custom_call.1} parent=59 // pred_check
          %p933 = pneg %p142
        $region66: #{tpu_custom_call.1} parent=59 // pred_check_branch
          %935 = sbr.rel (%p933) target = $region68
        $region67: #{tpu_custom_call.1} parent=59 // pred_region
          %s936 = smul.u32 8, %s29
          %p937 = scmp.lt.s32.totalorder %s28, 1
          %s938 = scalar_select %p937, %s28, 1
          %p939 = scmp.lt.s32.totalorder %s936, 7
          %s940 = scalar_select %p939, %s936, 7
          %s941 = smul.addr %s938, 8
          %s942 = sadd.s32 %s940, %s941
          %s943 = scalar_lea.vmem %s3, %s942
        $region68: #{tpu_custom_call.1} parent=59 // pred_fallthru
          _
        // Predicated region
        $region69: #{tpu_custom_call.1} parent=59 // pred_check
          %p944 = pneg %p170
        $region70: #{tpu_custom_call.1} parent=59 // pred_check_branch
          %946 = sbr.rel (%p944) target = $region72
        $region71: #{tpu_custom_call.1} parent=59 // pred_region
          %s947 = smul.u32 8, %s29
          %p948 = scmp.lt.s32.totalorder %s28, 1
          %s949 = scalar_select %p948, %s28, 1
          %p950 = scmp.lt.s32.totalorder %s947, 7
          %s951 = scalar_select %p950, %s947, 7
          %s952 = smul.addr %s949, 8
          %s953 = sadd.s32 %s951, %s952
          %s954 = scalar_lea.vmem %s4, %s953
        $region72: #{tpu_custom_call.1} parent=59 // pred_fallthru
          _
      $region60: #{tpu_custom_call.1} parent=5 // pred_fallthru
        _
    $region6: #{tpu_custom_call.1} parent=1 // loop_footer
      %s21 = sadd.s32 1, %s17
    $region7: #{tpu_custom_call.1} parent=1 // loop_footer_branch
      %16 = sbr.rel target = $region3
    $region8: #{tpu_custom_call.1} parent=1 // loop_exit
      _
    %955 = vsyncpa [#allocation4], 1
    %s956 = scalar_lea.sflag [#allocation4], 1
    %957 = vsyncpa %s956, 1
    %958 = vsyncpa [#allocation6], 1
    %s959 = scalar_lea.sflag [#allocation6], 1
    %960 = vsyncpa %s959, 1

</llo_original>
